<compile_context>
chip_gen: v5e
topology: v5e:2x2
jax: 0.10.0
libtpu: 0.0.40
codegen_flags: <defaults>
</compile_context>

<pallas_src>
import math

import jax
import jax.numpy as jnp
from jax.experimental import pallas as pl
from jax.experimental.pallas import tpu as pltpu


# ----------------------------- config (synthetic) -----------------------------
class Cfg:
    img_w = 800.0
    img_h = 320.0
    center_w = 400.0
    center_h = 160.0
    num_priors = 64


# --------------------------------- kernel -------------------------------------
def _make_init_emb_kernel(img_w, img_h, center_w, center_h, num_priors):
    def kernel(emb_ref, out_ref):
        # emb_ref: (3, P)   rows = [ys; xs; thetas], priors on the lane axis.
        # out_ref: (1, 2*P) lanes [0:P] = theta - 0.5, lanes [P:2P] = r / img_w.
        emb = emb_ref[...]                      # (3, P) float32
        ys = emb[0:1, :]                        # (1, P) sublane-row selects
        xs = emb[1:2, :]
        thetas = emb[2:3, :]

        xs = img_w * xs
        ys = img_h * (1.0 - ys)
        ang = thetas * math.pi
        rs = (xs - center_w) * jnp.sin(ang) + (ys - center_h) * jnp.cos(ang)

        t_row = thetas - 0.5                    # (1, P)
        r_row = rs * (1.0 / img_w)              # (1, P)

        # Lane-axis concat -> (1, 2*P) == (1, 128): one lane-dense store.
        out_ref[...] = jnp.concatenate([t_row, r_row], axis=1).astype(out_ref.dtype)

    return kernel


def compute_init_embeddings(raw_embeddings, cfg=Cfg):
    """Pallas equivalent of FixAnchorHead.get_init_embeddings (runs once at init).

    raw_embeddings: (num_priors, 3) float32 = [ys, xs, thetas].
    Returns: (num_priors, 2) float32 = [theta - 0.5, r / img_w].
    """
    num_priors = raw_embeddings.shape[0]
    assert num_priors <= 128, "lane-dense 2*P layout assumes num_priors <= 128"

    # Priors onto the lane axis: (P, 3) -> (3, P).  Init-time only.
    emb_t = jnp.transpose(raw_embeddings, (1, 0)).astype(jnp.float32)

    kernel = _make_init_emb_kernel(
        float(cfg.img_w), float(cfg.img_h),
        float(cfg.center_w), float(cfg.center_h),
        num_priors,
    )

    out_row = pl.pallas_call(
        kernel,
        out_shape=jax.ShapeDtypeStruct((1, 2 * num_priors), jnp.float32),
        in_specs=[pl.BlockSpec(memory_space=pltpu.MemorySpace.VMEM)],
        out_specs=pl.BlockSpec(memory_space=pltpu.MemorySpace.VMEM),
    )(emb_t)

    # (1, 2P) -> (2, P) -> (P, 2): restores the PyTorch buffer layout (init-time only).
    init_embeddings = out_row.reshape(2, num_priors).T
    return init_embeddings


# ------------------------------ module wrapper ---------------------------------
class FixAnchorHeadPallas:
    """Mirrors the PyTorch module: heavy lifting at init, forward = broadcast."""

    def __init__(self, raw_embeddings, cfg=Cfg):
        # TODO(synk): real module loads raw_embeddings from ./clr_anchor.pkl
        # ('heads.prior_embeddings.weight'); a synthetic tensor is used here.
        self.cfg = cfg
        self.num_priors = raw_embeddings.shape[0]
        self.anchor_embeddings = compute_init_embeddings(raw_embeddings, cfg)   # (P, 2)
        self.prior_id = jnp.arange(self.num_priors, dtype=jnp.int32)            # (P,)

    def forward(self, x):
        batch_size = x[0].shape[0]
        # XLA broadcasts fuse into consumers; no per-step pallas_call, no copies.
        anchor_embeddings = jnp.broadcast_to(
            self.anchor_embeddings[None, :, :],
            (batch_size, self.num_priors, 2))
        anchor_id = jnp.broadcast_to(
            self.prior_id[None, :], (batch_size, self.num_priors))
        return {"anchor_embeddings": anchor_embeddings, "anchor_id": anchor_id}


# ------------------------------ reference (JAX) --------------------------------
def _reference(x, raw_embeddings, cfg=Cfg):
    batch_size = x[0].shape[0]
    ys = raw_embeddings[..., 0]
    xs = raw_embeddings[..., 1]
    thetas = raw_embeddings[..., 2]
    xs = cfg.img_w * xs
    ys = cfg.img_h * (1.0 - ys)
    rs = (xs - cfg.center_w) * jnp.sin(thetas * math.pi) + \
         (ys - cfg.center_h) * jnp.cos(thetas * math.pi)
    thetas = thetas - 0.5
    rs = rs / cfg.img_w
    init_emb = jnp.stack([thetas, rs], axis=-1)                    # (P, 2)
    anchor_embeddings = jnp.broadcast_to(
        init_emb[None], (batch_size,) + init_emb.shape)
    prior_id = jnp.arange(cfg.num_priors, dtype=jnp.int32)
    anchor_id = jnp.broadcast_to(prior_id[None], (batch_size, cfg.num_priors))
    return {"anchor_embeddings": anchor_embeddings, "anchor_id": anchor_id}


# ----------------------------------- main --------------------------------------
if __name__ == "__main__":
    key = jax.random.PRNGKey(0)
    k_emb, k_x = jax.random.split(key)

    # Deterministic synthetic stand-in for 'heads.prior_embeddings.weight'.
    raw_embeddings = jax.random.uniform(
        k_emb, (Cfg.num_priors, 3), dtype=jnp.float32)

    # Small NCHW feature-map list; only the batch dim is used by forward().
    x = [jax.random.normal(k_x, (2, 4, 16, 16), dtype=jnp.float32)]

    head = FixAnchorHeadPallas(raw_embeddings, Cfg)      # Pallas kernel runs here (init)
    out = head.forward(x)                                # hot path: broadcast only
    jax.block_until_ready(out)

    ref = _reference(x, raw_embeddings)
    assert out["anchor_embeddings"].shape == (2, Cfg.num_priors, 2)
    assert out["anchor_id"].shape == (2, Cfg.num_priors)
    assert out["anchor_id"].dtype == jnp.int32
    assert jnp.allclose(out["anchor_embeddings"], ref["anchor_embeddings"],
                        atol=1e-5, rtol=1e-5)
    assert jnp.array_equal(out["anchor_id"], ref["anchor_id"])

    print("KERNEL_OK")
</pallas_src>

<mosaic_0001>
module attributes {stable_mosaic.version = 11 : i64} {
  func.func @kernel(%arg0: memref<3x64xf32, #tpu.memory_space<vmem>>, %arg1: memref<1x128xf32, #tpu.memory_space<vmem>>) attributes {dimension_semantics = [], scalar_prefetch = 0 : i64, scratch_operands = 0 : i64, tpu.core_type = #tpu.core_type<tc>} {
    %c0 = arith.constant 0 : index
    %c0_0 = arith.constant 0 : index
    %0 = vector.load %arg0[%c0, %c0_0] : memref<3x64xf32, #tpu.memory_space<vmem>>, vector<3x64xf32>
    %1 = vector.extract_strided_slice %0 {offsets = [0, 0], sizes = [1, 64], strides = [1, 1]} : vector<3x64xf32> to vector<1x64xf32>
    %2 = vector.extract_strided_slice %0 {offsets = [1, 0], sizes = [1, 64], strides = [1, 1]} : vector<3x64xf32> to vector<1x64xf32>
    %3 = vector.extract_strided_slice %0 {offsets = [2, 0], sizes = [1, 64], strides = [1, 1]} : vector<3x64xf32> to vector<1x64xf32>
    %cst = arith.constant 8.000000e+02 : f32
    %4 = vector.broadcast %cst : f32 to vector<1x64xf32>
    %5 = arith.mulf %4, %2 : vector<1x64xf32>
    %cst_1 = arith.constant 1.000000e+00 : f32
    %6 = vector.broadcast %cst_1 : f32 to vector<1x64xf32>
    %7 = arith.subf %6, %1 : vector<1x64xf32>
    %cst_2 = arith.constant 3.200000e+02 : f32
    %8 = vector.broadcast %cst_2 : f32 to vector<1x64xf32>
    %9 = arith.mulf %8, %7 : vector<1x64xf32>
    %cst_3 = arith.constant 3.14159274 : f32
    %10 = vector.broadcast %cst_3 : f32 to vector<1x64xf32>
    %11 = arith.mulf %3, %10 : vector<1x64xf32>
    %cst_4 = arith.constant 4.000000e+02 : f32
    %12 = vector.broadcast %cst_4 : f32 to vector<1x64xf32>
    %13 = arith.subf %5, %12 : vector<1x64xf32>
    %14 = math.sin %11 : vector<1x64xf32>
    %15 = arith.mulf %13, %14 : vector<1x64xf32>
    %cst_5 = arith.constant 1.600000e+02 : f32
    %16 = vector.broadcast %cst_5 : f32 to vector<1x64xf32>
    %17 = arith.subf %9, %16 : vector<1x64xf32>
    %18 = math.cos %11 : vector<1x64xf32>
    %19 = arith.mulf %17, %18 : vector<1x64xf32>
    %20 = arith.addf %15, %19 : vector<1x64xf32>
    %cst_6 = arith.constant 5.000000e-01 : f32
    %21 = vector.broadcast %cst_6 : f32 to vector<1x64xf32>
    %22 = arith.subf %3, %21 : vector<1x64xf32>
    %cst_7 = arith.constant 1.250000e-03 : f32
    %23 = vector.broadcast %cst_7 : f32 to vector<1x64xf32>
    %24 = arith.mulf %20, %23 : vector<1x64xf32>
    %25 = tpu.concatenate %22, %24 in 1 : vector<1x64xf32>, vector<1x64xf32> -> vector<1x128xf32>
    %c0_8 = arith.constant 0 : index
    %c0_9 = arith.constant 0 : index
    %26 = vector.load %arg1[%c0_8, %c0_9] : memref<1x128xf32, #tpu.memory_space<vmem>>, vector<1x128xf32>
    tpu.vector_store %arg1[%c0_8, %c0_9], %25 {strides = array<i32>} : memref<1x128xf32, #tpu.memory_space<vmem>>, vector<1x128xf32>,
    return
  }
}

</mosaic_0001>

<llo_original>
// kernel: tpu_custom_call.1
$region0: #{tpu_custom_call.1}
  #allocation0 [shape = 'u32[]', space=smem, size = 0x4, offset = 0x4, fixed_abs, tag = 'smem constant byte address 0x4 - core index']
  #allocation1 [shape = 'u32[72,128]{1,0:T(1,128)}', space=vmem, size = 0x9000, scoped, tag = 'internal scratch']
  %s0 = inlined_call_operand.hbm [shape: f32[3,64], index: 0, kind: input, shape index: {}]
  %s1 = inlined_call_operand.hbm [shape: f32[1,128], index: 1, kind: output, shape index: {}]
  %s2 = sld [smem:[#allocation0]]
  $region18: #{tpu_custom_call.1} parent=0
    _
  %s4 = ssub.s32 1, %s2
  %s5 = scalar_select 0, %s4, %s2
  $region1: #{tpu_custom_call.1} parent=0
    #allocation2 [shape = 'u8[2048]{0}', space=vmem, size = 0x800, scoped, tag = 'input window, operand 0, single buffered']
    #allocation3 [shape = 's32[1]{0}', space=sflag, size = 0x4, scoped, tag = 'scoped memory for tpu_custom_call.1']
    #allocation4 [shape = 's32[1]{0}', space=sflag, size = 0x4, scoped, tag = 'scoped memory for tpu_custom_call.1']
    #allocation5 [shape = 'u8[512]{0}', space=vmem, size = 0x400, scoped, tag = 'output window, operand 0, single buffered']
    %6 = vsyncpa [#allocation3], 0
    %7 = vsyncpa [#allocation4], 0
    // Predicated region
    $region2: #{tpu_custom_call.1} parent=1 // pred_check
      _
    $region3: #{tpu_custom_call.1} parent=1 // pred_check_branch
      %9 = sbr.rel (0) target = $region5
    $region4: #{tpu_custom_call.1} parent=1 // pred_region
      %11 = vsyncadd [#allocation3], 0
      %s13 = sshll.u32 %s0, 4
      %s14 = int_to_ptr.hbm [resolvable:$true] %s13
      %s15 = sshll.u32 [#allocation2], 4
      %s16 = int_to_ptr.vmem [resolvable:$true] %s15
      %18 = dma.hbm_to_vmem [thread:$0]  %s14, 64, %s16, [#allocation3]
    $region5: #{tpu_custom_call.1} parent=1 // pred_fallthru
      _
    // Predicated region
    $region6: #{tpu_custom_call.1} parent=1 // pred_check
      _
    $region7: #{tpu_custom_call.1} parent=1 // pred_check_branch
      %20 = sbr.rel (0) target = $region9
    $region8: #{tpu_custom_call.1} parent=1 // pred_region
      %22 = dma.done [#allocation3], 64
    $region9: #{tpu_custom_call.1} parent=1 // pred_fallthru
      _
    %v23 = vld [vmem:[#allocation2] sm:$0x7]
    %v24 = vmul.f32 %v23, 800.0
    %v25 = vsub.f32 1.0, %v23
    %v26 = vmul.f32 %v25, 320.0
    %v27 = vmul.f32 %v23, 3.1415927
    %v28 = vsub.f32 %v24, 400.0
    %v29 = vand.u32 2147483647, %v27
    %vm30 = vcmp.le.f32.partialorder %v29, 0.7853982
    %vm31 = vcmp.lt.s32.totalorder %v27, 0
    %v32 = vand.u32 %v27, 2139095040
    %v33 = vshrl.u32 %v32, 23
    %v34 = vsub.s32 %v33, 127
    %v35 = vand.u32 2147483647, %v27
    %v36 = vand.u32 %v35, 8388607
    %v37 = vor.u32 %v36, 8388608
    %v38 = vsub.s32 0, %v37
    %v39 = vadd.s32 %v34, 1
    %vm40 = vcmp.gt.s32.totalorder %v39, 0
    %v41 = vsel %vm40, %v39, 0
    %v42 = vshrl.u32 %v41, 5
    %v43 = vand.u32 %v41, 31
    %v44 = vsub.s32 32, %v43
    %v45 = vshrl.u32 683565275, %v44
    %v46 = vshll.u32 683565275, %v43
    %v47 = vshrl.u32 2475754826, %v44
    %v48 = vor.u32 %v46, %v47
    %v49 = vshll.u32 2475754826, %v43
    %v50 = vshrl.u32 2131351028, %v44
    %v51 = vor.u32 %v49, %v50
    %v52 = vshll.u32 2131351028, %v43
    %v53 = vshrl.u32 2102212464, %v44
    %v54 = vor.u32 %v52, %v53
    %v55 = vshll.u32 2102212464, %v43
    %v56 = vshrl.u32 920167782, %v44
    %v57 = vor.u32 %v55, %v56
    %v58 = vshll.u32 920167782, %v43
    %v59 = vshrl.u32 1326507024, %v44
    %v60 = vor.u32 %v58, %v59
    %vm61 = vcmp.lt.s32.totalorder %v42, 1
    %vm62 = vcmp.lt.s32.totalorder %v42, 2
    %vm63 = vcmp.lt.s32.totalorder %v42, 3
    %vm64 = vcmp.lt.s32.totalorder %v42, 4
    %v65 = vsel %vm61, %v45, %v48
    %v66 = vsel %vm64, %v54, 2102212464
    %v67 = vsel %vm63, %v51, %v66
    %v68 = vsel %vm62, %v65, %v67
    %v69 = vsel %vm61, %v48, %v51
    %v70 = vsel %vm64, %v57, 920167782
    %v71 = vsel %vm63, %v54, %v70
    %v72 = vsel %vm62, %v69, %v71
    %v73 = vsel %vm61, %v51, %v54
    %v74 = vsel %vm64, %v60, 1326507024
    %v75 = vsel %vm63, %v57, %v74
    %v76 = vsel %vm62, %v73, %v75
    %v77 = vshll.u32 %v37, 8
    %v78 = vand.u32 %v77, 65535
    %v79 = vshrl.u32 %v77, 16
    %v80 = vand.u32 %v76, 65535
    %v81 = vshrl.u32 %v76, 16
    %v82 = vmul.u32 %v78, %v80
    %v83 = vmul.u32 %v78, %v81
    %v84 = vmul.u32 %v79, %v80
    %v85 = vmul.u32 %v79, %v81
    %v86 = vshll.u32 %v83, 16
    %v87 = vshrl.u32 %v83, 16
    %v88 = vshll.u32 %v84, 16
    %v89 = vshrl.u32 %v84, 16
    %vm90 = vc.u32 %v82, %v86
    %v91 = vsel %vm90, 1, 0
    %v92 = vadd.s32 %v82, %v86
    %v93 = vadd.s32 %v85, %v91
    %vm94 = vc.u32 %v92, %v88
    %v95 = vsel %vm94, 1, 0
    %v96 = vadd.s32 %v92, %v88
    %v97 = vadd.s32 %v93, %v95
    %v98 = vadd.s32 %v97, %v87
    %v99 = vadd.s32 %v98, %v89
    %v100 = vand.u32 %v77, 65535
    %v101 = vshrl.u32 %v77, 16
    %v102 = vand.u32 %v72, 65535
    %v103 = vshrl.u32 %v72, 16
    %v104 = vmul.u32 %v100, %v102
    %v105 = vmul.u32 %v100, %v103
    %v106 = vmul.u32 %v101, %v102
    %v107 = vmul.u32 %v101, %v103
    %v108 = vshll.u32 %v105, 16
    %v109 = vshrl.u32 %v105, 16
    %v110 = vshll.u32 %v106, 16
    %v111 = vshrl.u32 %v106, 16
    %vm112 = vc.u32 %v104, %v108
    %v113 = vsel %vm112, 1, 0
    %v114 = vadd.s32 %v104, %v108
    %v115 = vadd.s32 %v107, %v113
    %vm116 = vc.u32 %v114, %v110
    %v117 = vsel %vm116, 1, 0
    %v118 = vadd.s32 %v114, %v110
    %v119 = vadd.s32 %v115, %v117
    %v120 = vadd.s32 %v119, %v109
    %v121 = vadd.s32 %v120, %v111
    %v122 = vmul.u32 %v77, %v68
    %v123 = vadd.s32 %v99, %v118
    %vm124 = vc.u32 %v99, %v118
    %v125 = vadd.s32 %v121, 1
    %v126 = vsel %vm124, %v125, %v121
    %v127 = vadd.s32 %v122, %v126
    %v128 = vadd.s32 %v127, 536870912
    %v129 = vshrl.u32 %v128, 30
    %v130 = vshll.u32 %v129, 30
    %v131 = vsub.s32 %v127, %v130
    %vm132 = vcmp.lt.s32.totalorder %v131, 0
    %v133 = vsub.s32 0, %v131
    %v134 = vsel %vm132, %v133, %v131
    %v135 = vclz %v134
    %v136 = vsub.s32 %v135, 2
    %vm137 = vcmp.gt.s32.totalorder 0, %v136
    %v138 = vsel %vm137, 0, %v136
    %v139 = vsub.s32 32, %v138
    %v140 = vshll.u32 %v131, %v138
    %v141 = vshrl.u32 %v123, %v139
    %v142 = vor.u32 %v140, %v141
    %v143 = vsub.s32 4294967266, %v138
    %v144 = vadd.s32 %v143, 127
    %v145 = vshll.u32 %v144, 23
    %v146 = vor.u32 4788187, %v145
    %v147 = vand.u32 2147483647, %v146
    %v149 = vcvt.s32.f32 %v142
    %v150 = vmul.f32 %v149, %v147
    %v151 = vxor.u32 %v150, 2147483648
    %v152 = vsel %vm31, %v151, %v150
    %v153 = vsub.s32 4, %v129
    %v154 = vsel %vm31, %v153, %v129
    %v155 = vsel %vm30, %v27, %v152
    %v156 = vsel %vm30, 0, %v154
    %v157 = vmul.f32 %v155, %v155
    %v158 = vmul.f32 %v157, -0.001358992
    %v159 = vadd.f32 %v158, 0.041655596
    %v160 = vmul.f32 %v157, %v159
    %v161 = vadd.f32 %v160, -0.4999988
    %v162 = vmul.f32 %v157, %v161
    %v163 = vadd.f32 1.0, %v162
    %v164 = vmul.f32 %v155, %v155
    %v165 = vmul.f32 %v164, -0.00019511016
    %v166 = vadd.f32 %v165, 0.008332121
    %v167 = vmul.f32 %v164, %v166
    %v168 = vadd.f32 %v167, -0.16666654
    %v169 = vmul.f32 %v164, %v168
    %v170 = vadd.f32 %v169, 1.0
    %v171 = vmul.f32 %v170, %v155
    %vm172 = vweird.f32 %v27
    %v173 = vadd.s32 %v156, 3
    %v174 = vand.u32 %v173, 3
    %vm175 = vcmp.lt.s32.totalorder %v174, 2
    %vm176 = vcmp.eq.s32.totalorder %v174, 0
    %v177 = vxor.u32 %v171, 2147483648
    %v178 = vsel %vm176, %v163, %v177
    %vm179 = vcmp.eq.s32.totalorder %v174, 2
    %v180 = vxor.u32 %v163, 2147483648
    %v181 = vsel %vm179, %v180, %v171
    %v182 = vsel %vm175, %v178, %v181
    %v183 = vsel %vm172, nan, %v182
    %v185 = vrot.slane %v183, 1
    %v187 = vmul.f32 %v28, %v185
    %v188 = vsub.f32 %v26, 160.0
    %v189 = vand.u32 2147483647, %v27
    %vm190 = vcmp.le.f32.partialorder %v189, 0.7853982
    %vm191 = vcmp.lt.s32.totalorder %v27, 0
    %v192 = vand.u32 %v27, 2139095040
    %v193 = vshrl.u32 %v192, 23
    %v194 = vsub.s32 %v193, 127
    %v195 = vand.u32 2147483647, %v27
    %v196 = vand.u32 %v195, 8388607
    %v197 = vor.u32 %v196, 8388608
    %v198 = vsub.s32 0, %v197
    %v199 = vadd.s32 %v194, 1
    %vm200 = vcmp.gt.s32.totalorder %v199, 0
    %v201 = vsel %vm200, %v199, 0
    %v202 = vshrl.u32 %v201, 5
    %v203 = vand.u32 %v201, 31
    %v204 = vsub.s32 32, %v203
    %v205 = vshrl.u32 683565275, %v204
    %v206 = vshll.u32 683565275, %v203
    %v207 = vshrl.u32 2475754826, %v204
    %v208 = vor.u32 %v206, %v207
    %v209 = vshll.u32 2475754826, %v203
    %v210 = vshrl.u32 2131351028, %v204
    %v211 = vor.u32 %v209, %v210
    %v212 = vshll.u32 2131351028, %v203
    %v213 = vshrl.u32 2102212464, %v204
    %v214 = vor.u32 %v212, %v213
    %v215 = vshll.u32 2102212464, %v203
    %v216 = vshrl.u32 920167782, %v204
    %v217 = vor.u32 %v215, %v216
    %v218 = vshll.u32 920167782, %v203
    %v219 = vshrl.u32 1326507024, %v204
    %v220 = vor.u32 %v218, %v219
    %vm221 = vcmp.lt.s32.totalorder %v202, 1
    %vm222 = vcmp.lt.s32.totalorder %v202, 2
    %vm223 = vcmp.lt.s32.totalorder %v202, 3
    %vm224 = vcmp.lt.s32.totalorder %v202, 4
    %v225 = vsel %vm221, %v205, %v208
    %v226 = vsel %vm224, %v214, 2102212464
    %v227 = vsel %vm223, %v211, %v226
    %v228 = vsel %vm222, %v225, %v227
    %v229 = vsel %vm221, %v208, %v211
    %v230 = vsel %vm224, %v217, 920167782
    %v231 = vsel %vm223, %v214, %v230
    %v232 = vsel %vm222, %v229, %v231
    %v233 = vsel %vm221, %v211, %v214
    %v234 = vsel %vm224, %v220, 1326507024
    %v235 = vsel %vm223, %v217, %v234
    %v236 = vsel %vm222, %v233, %v235
    %v237 = vshll.u32 %v197, 8
    %v238 = vand.u32 %v237, 65535
    %v239 = vshrl.u32 %v237, 16
    %v240 = vand.u32 %v236, 65535
    %v241 = vshrl.u32 %v236, 16
    %v242 = vmul.u32 %v238, %v240
    %v243 = vmul.u32 %v238, %v241
    %v244 = vmul.u32 %v239, %v240
    %v245 = vmul.u32 %v239, %v241
    %v246 = vshll.u32 %v243, 16
    %v247 = vshrl.u32 %v243, 16
    %v248 = vshll.u32 %v244, 16
    %v249 = vshrl.u32 %v244, 16
    %vm250 = vc.u32 %v242, %v246
    %v251 = vsel %vm250, 1, 0
    %v252 = vadd.s32 %v242, %v246
    %v253 = vadd.s32 %v245, %v251
    %vm254 = vc.u32 %v252, %v248
    %v255 = vsel %vm254, 1, 0
    %v256 = vadd.s32 %v252, %v248
    %v257 = vadd.s32 %v253, %v255
    %v258 = vadd.s32 %v257, %v247
    %v259 = vadd.s32 %v258, %v249
    %v260 = vand.u32 %v237, 65535
    %v261 = vshrl.u32 %v237, 16
    %v262 = vand.u32 %v232, 65535
    %v263 = vshrl.u32 %v232, 16
    %v264 = vmul.u32 %v260, %v262
    %v265 = vmul.u32 %v260, %v263
    %v266 = vmul.u32 %v261, %v262
    %v267 = vmul.u32 %v261, %v263
    %v268 = vshll.u32 %v265, 16
    %v269 = vshrl.u32 %v265, 16
    %v270 = vshll.u32 %v266, 16
    %v271 = vshrl.u32 %v266, 16
    %vm272 = vc.u32 %v264, %v268
    %v273 = vsel %vm272, 1, 0
    %v274 = vadd.s32 %v264, %v268
    %v275 = vadd.s32 %v267, %v273
    %vm276 = vc.u32 %v274, %v270
    %v277 = vsel %vm276, 1, 0
    %v278 = vadd.s32 %v274, %v270
    %v279 = vadd.s32 %v275, %v277
    %v280 = vadd.s32 %v279, %v269
    %v281 = vadd.s32 %v280, %v271
    %v282 = vmul.u32 %v237, %v228
    %v283 = vadd.s32 %v259, %v278
    %vm284 = vc.u32 %v259, %v278
    %v285 = vadd.s32 %v281, 1
    %v286 = vsel %vm284, %v285, %v281
    %v287 = vadd.s32 %v282, %v286
    %v288 = vadd.s32 %v287, 536870912
    %v289 = vshrl.u32 %v288, 30
    %v290 = vshll.u32 %v289, 30
    %v291 = vsub.s32 %v287, %v290
    %vm292 = vcmp.lt.s32.totalorder %v291, 0
    %v293 = vsub.s32 0, %v291
    %v294 = vsel %vm292, %v293, %v291
    %v295 = vclz %v294
    %v296 = vsub.s32 %v295, 2
    %vm297 = vcmp.gt.s32.totalorder 0, %v296
    %v298 = vsel %vm297, 0, %v296
    %v299 = vsub.s32 32, %v298
    %v300 = vshll.u32 %v291, %v298
    %v301 = vshrl.u32 %v283, %v299
    %v302 = vor.u32 %v300, %v301
    %v303 = vsub.s32 4294967266, %v298
    %v304 = vadd.s32 %v303, 127
    %v305 = vshll.u32 %v304, 23
    %v306 = vor.u32 4788187, %v305
    %v307 = vand.u32 2147483647, %v306
    %v309 = vcvt.s32.f32 %v302
    %v310 = vmul.f32 %v309, %v307
    %v311 = vxor.u32 %v310, 2147483648
    %v312 = vsel %vm191, %v311, %v310
    %v313 = vsub.s32 4, %v289
    %v314 = vsel %vm191, %v313, %v289
    %v315 = vsel %vm190, %v27, %v312
    %v316 = vsel %vm190, 0, %v314
    %v317 = vmul.f32 %v315, %v315
    %v318 = vmul.f32 %v317, -0.001358992
    %v319 = vadd.f32 %v318, 0.041655596
    %v320 = vmul.f32 %v317, %v319
    %v321 = vadd.f32 %v320, -0.4999988
    %v322 = vmul.f32 %v317, %v321
    %v323 = vadd.f32 1.0, %v322
    %v324 = vmul.f32 %v315, %v315
    %v325 = vmul.f32 %v324, -0.00019511016
    %v326 = vadd.f32 %v325, 0.008332121
    %v327 = vmul.f32 %v324, %v326
    %v328 = vadd.f32 %v327, -0.16666654
    %v329 = vmul.f32 %v324, %v328
    %v330 = vadd.f32 %v329, 1.0
    %v331 = vmul.f32 %v330, %v315
    %vm332 = vweird.f32 %v27
    %v333 = vand.u32 %v316, 3
    %vm334 = vcmp.lt.s32.totalorder %v333, 2
    %vm335 = vcmp.eq.s32.totalorder %v333, 0
    %v336 = vxor.u32 %v331, 2147483648
    %v337 = vsel %vm335, %v323, %v336
    %vm338 = vcmp.eq.s32.totalorder %v333, 2
    %v339 = vxor.u32 %v323, 2147483648
    %v340 = vsel %vm338, %v339, %v331
    %v341 = vsel %vm334, %v337, %v340
    %v342 = vsel %vm332, nan, %v341
    %v344 = vrot.slane %v342, 2
    %v346 = vmul.f32 %v188, %v344
    %v348 = vrot.slane %v346, 7
    %v350 = vadd.f32 %v187, %v348
    %v351 = vsub.f32 %v23, 0.5
    %v352 = vmul.f32 %v350, 0.00125
    %v354 = vrot.slane %v352, 7
    %355 = vrot.lane.b32.xlu0 %v354, 64
    %v356 = vpop.permute.xlu0 %355
    %vm358 = vcmask 523264
    %v359 = vsel %vm358, %v351, %v356
    %360 = vst [vmem:[#allocation5 - $0x2] sm:$0x4] %v359
    // Predicated region
    $region10: #{tpu_custom_call.1} parent=1 // pred_check
      _
    $region11: #{tpu_custom_call.1} parent=1 // pred_check_branch
      %362 = sbr.rel (0) target = $region13
    $region12: #{tpu_custom_call.1} parent=1 // pred_region
      %364 = vsyncadd [#allocation4], 0
      %s366 = sshll.u32 [#allocation5], 4
      %s367 = int_to_ptr.vmem [resolvable:$true] %s366
      %s368 = sshll.u32 %s1, 4
      %s369 = int_to_ptr.hbm [resolvable:$true] %s368
      %371 = dma.vmem_to_hbm [thread:$0]  %s367, 16, %s369, [#allocation4]
    $region13: #{tpu_custom_call.1} parent=1 // pred_fallthru
      _
    // Predicated region
    $region14: #{tpu_custom_call.1} parent=1 // pred_check
      _
    $region15: #{tpu_custom_call.1} parent=1 // pred_check_branch
      %373 = sbr.rel (0) target = $region17
    $region16: #{tpu_custom_call.1} parent=1 // pred_region
      %375 = dma.done [#allocation4], 16
    $region17: #{tpu_custom_call.1} parent=1 // pred_fallthru
      _
    %376 = vsyncpa [#allocation3], 1
    %377 = vsyncpa [#allocation4], 1

</llo_original>
